<compile_context>
chip_gen: v7x
topology: tpu7x:2x2x1
jax: 0.10.0
libtpu: 0.0.40
codegen_flags: <defaults>
</compile_context>

<pallas_src>
import functools

import jax
import jax.numpy as jnp
import numpy as np
from jax.experimental import pallas as pl
from jax.experimental.pallas import tpu as pltpu

NEG_SLOPE = 0.01   # PyTorch F.leaky_relu default negative slope
EPS = 1e-5         # nn.BatchNorm2d default eps


# --------------------------------------------------------------------------
# Kernel 1: conv1 (1x1, BN folded, LeakyReLU) [+ fused shortcut projection]
# --------------------------------------------------------------------------
def _conv1_proj_kernel(x_ref, w1_ref, b1_ref, ws_ref, bs_ref, h1_ref, sc_ref):
    x = x_ref[...]                                                  # bf16 [tm, Cin]
    h = jnp.dot(x, w1_ref[...], preferred_element_type=jnp.float32) + b1_ref[...]
    h1_ref[...] = jnp.where(h > 0, h, NEG_SLOPE * h).astype(h1_ref.dtype)
    s = jnp.dot(x, ws_ref[...], preferred_element_type=jnp.float32) + bs_ref[...]
    sc_ref[...] = s.astype(sc_ref.dtype)


def _conv1_kernel(x_ref, w1_ref, b1_ref, h1_ref):
    x = x_ref[...]
    h = jnp.dot(x, w1_ref[...], preferred_element_type=jnp.float32) + b1_ref[...]
    h1_ref[...] = jnp.where(h > 0, h, NEG_SLOPE * h).astype(h1_ref.dtype)


def _pick_tm(m):
    # Largest power-of-two row tile <= 1024 that divides m while leaving >= 2
    # grid steps (keeps both v7x TensorCores busy); fall back to one tile.
    for tm in (1024, 512, 256, 128, 64, 32, 16, 8):
        if tm <= m // 2 and m % tm == 0:
            return tm
    return m


def conv1_and_shortcut(x2d_bf16, w1, b1, ws=None, bs=None):
    m, cin = x2d_bf16.shape
    cout = w1.shape[1]
    tm = _pick_tm(m)
    grid = (m // tm,)
    x_spec = pl.BlockSpec((tm, cin), lambda i: (i, 0))
    w_spec = pl.BlockSpec((cin, cout), lambda i: (0, 0))
    v_spec = pl.BlockSpec((1, cout), lambda i: (0, 0))
    o_spec = pl.BlockSpec((tm, cout), lambda i: (i, 0))
    params = pltpu.CompilerParams(dimension_semantics=("parallel",))
    if ws is None:
        return pl.pallas_call(
            _conv1_kernel,
            out_shape=jax.ShapeDtypeStruct((m, cout), jnp.bfloat16),
            grid=grid,
            in_specs=[x_spec, w_spec, v_spec],
            out_specs=o_spec,
            compiler_params=params,
        )(x2d_bf16, w1, b1)
    return pl.pallas_call(
        _conv1_proj_kernel,
        out_shape=(jax.ShapeDtypeStruct((m, cout), jnp.bfloat16),
                   jax.ShapeDtypeStruct((m, cout), jnp.float32)),
        grid=grid,
        in_specs=[x_spec, w_spec, v_spec, w_spec, v_spec],
        out_specs=(o_spec, o_spec),
        compiler_params=params,
    )(x2d_bf16, w1, b1, ws, bs)


# --------------------------------------------------------------------------
# Kernel 2: grouped 3x3 conv2 + 1x1 conv3 + extra BN + residual add + leaky
# --------------------------------------------------------------------------
def _conv2_conv3_tail_kernel(xpad_ref, sc_ref, w2_ref, b2_ref, w3_ref, b3_ref,
                             sbn_ref, bbn_ref, o_ref, *, groups, gw, ho, wo,
                             stride):
    xp = xpad_ref[0]                                   # (Hp, Wp, C) bf16 in VMEM
    # hoist loads / per-group channel slices out of the row loop
    xp_groups = [xp[:, :, g * gw:(g + 1) * gw] for g in range(groups)]
    w2_g = [w2_ref[g] for g in range(groups)]          # (9*gw, gw) bf16 each
    w3 = w3_ref[...]
    b2 = b2_ref[...]
    b3 = b3_ref[...]
    s_bn = sbn_ref[...]
    b_bn = bbn_ref[...]

    col_span = stride * (wo - 1) + 1
    for i in range(ho):                                # one output row / iter
        group_outs = []
        for g in range(groups):
            xg = xp_groups[g]
            pieces = []
            for di in range(3):
                row = xg[stride * i + di]              # (Wp, gw)
                for dj in range(3):
                    # TODO(synk): stride > 1 relies on strided in-kernel tap
                    # slicing and is not exercised / tuned here (test stride=1).
                    pieces.append(row[dj:dj + col_span:stride])      # (wo, gw)
            lhs = jnp.concatenate(pieces, axis=-1)     # (wo, 9*gw) bf16
            group_outs.append(
                jnp.dot(lhs, w2_g[g], preferred_element_type=jnp.float32))
        h2 = jnp.concatenate(group_outs, axis=-1) + b2                 # (wo, C)
        h2 = jnp.where(h2 > 0, h2, NEG_SLOPE * h2)
        h3 = jnp.dot(h2.astype(jnp.bfloat16), w3,
                     preferred_element_type=jnp.float32) + b3
        h3 = jnp.where(h3 > 0, h3, NEG_SLOPE * h3)
        y = h3 * s_bn + b_bn + sc_ref[0, i]            # extra BN + residual
        o_ref[0, i] = jnp.where(y > 0, y, NEG_SLOPE * y).astype(o_ref.dtype)


def conv2_conv3_tail(h1pad, sc, w2g, b2, w3, b3, s_bn, b_bn, *, groups, ho, wo,
                     stride):
    n, hp, wp, c = h1pad.shape
    gw = c // groups
    kernel = functools.partial(_conv2_conv3_tail_kernel, groups=groups, gw=gw,
                               ho=ho, wo=wo, stride=stride)
    return pl.pallas_call(
        kernel,
        out_shape=jax.ShapeDtypeStruct((n, ho, wo, c), jnp.float32),
        grid=(n,),
        in_specs=[
            pl.BlockSpec((1, hp, wp, c), lambda b: (b, 0, 0, 0)),
            pl.BlockSpec((1, ho, wo, c), lambda b: (b, 0, 0, 0)),
            pl.BlockSpec(w2g.shape, lambda b: (0, 0, 0)),
            pl.BlockSpec((1, c), lambda b: (0, 0)),
            pl.BlockSpec((c, c), lambda b: (0, 0)),
            pl.BlockSpec((1, c), lambda b: (0, 0)),
            pl.BlockSpec((1, c), lambda b: (0, 0)),
            pl.BlockSpec((1, c), lambda b: (0, 0)),
        ],
        out_specs=pl.BlockSpec((1, ho, wo, c), lambda b: (b, 0, 0, 0)),
        compiler_params=pltpu.CompilerParams(dimension_semantics=("parallel",)),
    )(h1pad, sc, w2g, b2, w3, b3, s_bn, b_bn)


# --------------------------------------------------------------------------
# Parameter construction (deterministic, synthetic; shapes follow __init__)
# --------------------------------------------------------------------------
def fold_bn(gamma, beta, mean, var, eps=EPS):
    scale = gamma / jnp.sqrt(var + eps)
    bias = beta - mean * scale
    return scale, bias


def bn_params(key, c):
    k1, k2, k3, k4 = jax.random.split(key, 4)
    gamma = 1.0 + 0.1 * jax.random.normal(k1, (c,), jnp.float32)
    beta = 0.1 * jax.random.normal(k2, (c,), jnp.float32)
    mean = 0.1 * jax.random.normal(k3, (c,), jnp.float32)
    var = jnp.abs(1.0 + 0.1 * jax.random.normal(k4, (c,), jnp.float32))
    return gamma, beta, mean, var


def make_params(key, in_channels, cardinality, group_width):
    cout = cardinality * group_width
    ks = jax.random.split(key, 9)
    w1 = 0.1 * jax.random.normal(ks[0], (cout, in_channels, 1, 1), jnp.float32)
    w2 = 0.1 * jax.random.normal(ks[1], (cout, group_width, 3, 3), jnp.float32)
    w3 = 0.1 * jax.random.normal(ks[2], (cout, cout, 1, 1), jnp.float32)
    ws = 0.1 * jax.random.normal(ks[3], (cout, in_channels, 1, 1), jnp.float32)
    bn1 = bn_params(ks[4], cout)
    bn2 = bn_params(ks[5], cout)
    bn3 = bn_params(ks[6], cout)
    bn_extra = bn_params(ks[7], cout)
    bn_s = bn_params(ks[8], cout)
    torch_p = dict(w1=w1, w2=w2, w3=w3, ws=ws,
                   bn1=bn1, bn2=bn2, bn3=bn3, bn=bn_extra, bns=bn_s)

    s1, b1 = fold_bn(*bn1)
    s2, b2 = fold_bn(*bn2)
    s3, b3 = fold_bn(*bn3)
    sbn, bbn = fold_bn(*bn_extra)
    ss, bs = fold_bn(*bn_s)
    use_proj = in_channels != cout

    # BN scales folded into the conv weights; weights stored in bf16 (MXU).
    w1m = (jnp.transpose(w1[:, :, 0, 0]) * s1[None, :]).astype(jnp.bfloat16)
    w3m = (jnp.transpose(w3[:, :, 0, 0]) * s3[None, :]).astype(jnp.bfloat16)
    wsm = (jnp.transpose(ws[:, :, 0, 0]) * ss[None, :]).astype(jnp.bfloat16) \
        if use_proj else None

    # Grouped 3x3 weights -> per-group [9*gw_in, gw_out], rows ordered
    # tap-major (kh, kw) then input channel, matching the in-kernel lhs.
    w2s = w2 * s2[:, None, None, None]
    w2g = w2s.reshape(cardinality, group_width, group_width, 3, 3)  # [G,o,i,kh,kw]
    w2g = jnp.transpose(w2g, (0, 3, 4, 2, 1))                       # [G,kh,kw,i,o]
    w2g = w2g.reshape(cardinality, 9 * group_width, group_width)
    w2g = w2g.astype(jnp.bfloat16)

    pallas_p = dict(
        w1=w1m, w2=w2g, w3=w3m, ws=wsm,
        b1=b1.reshape(1, cout), b2=b2.reshape(1, cout), b3=b3.reshape(1, cout),
        s_bn=sbn.reshape(1, cout), b_bn=bbn.reshape(1, cout),
        bs=bs.reshape(1, cout) if use_proj else None,
        cardinality=cardinality, group_width=group_width,
    )
    return torch_p, pallas_p


# --------------------------------------------------------------------------
# ResidualBlock forward (Pallas path)
# --------------------------------------------------------------------------
def residual_block_forward(x_nchw, p, *, stride=1):
    cardinality = p["cardinality"]
    x = jnp.transpose(x_nchw, (0, 2, 3, 1))          # NCHW -> NHWC (f32)
    n, h, w, cin = x.shape
    cout = p["w1"].shape[1]
    ho = (h + 2 - 3) // stride + 1
    wo = (w + 2 - 3) // stride + 1

    x2d = x.reshape(n * h * w, cin).astype(jnp.bfloat16)
    if p["ws"] is not None:
        h1, sc = conv1_and_shortcut(x2d, p["w1"], p["b1"], p["ws"], p["bs"])
        sc = sc.reshape(n, h, w, cout)
    else:
        h1 = conv1_and_shortcut(x2d, p["w1"], p["b1"])
        sc = x                                        # identity shortcut (f32)

    # Zero-pad conv1 output for the 3x3 conv.  This is the only extra HBM
    # pass; the 9x im2col tensor is never materialised.
    h1pad = jnp.pad(h1.reshape(n, h, w, cout), ((0, 0), (1, 1), (1, 1), (0, 0)))

    if stride != 1:
        # AvgPool2d(stride) on the shortcut path.
        # TODO(synk): assumes h, w divisible by stride (as in the original net).
        sc = sc.reshape(n, h // stride, stride, w // stride, stride, cout)
        sc = sc.mean(axis=(2, 4))
    sc = sc.reshape(n, ho, wo, cout).astype(jnp.float32)

    out = conv2_conv3_tail(h1pad, sc, p["w2"], p["b2"], p["w3"], p["b3"],
                           p["s_bn"], p["b_bn"], groups=cardinality,
                           ho=ho, wo=wo, stride=stride)
    return jnp.transpose(out, (0, 3, 1, 2))           # back to NCHW
    # TODO(synk): in a full network keep activations NHWC end-to-end to avoid
    # the per-block boundary transposes.


# --------------------------------------------------------------------------
# Pure-JAX reference (inference-mode BN) for verification
# --------------------------------------------------------------------------
def reference_forward(x, tp, *, stride, cardinality, in_channels, out_channels):
    def conv(x, w, s=1, pad=0, groups=1):
        return jax.lax.conv_general_dilated(
            x, w, (s, s), [(pad, pad), (pad, pad)],
            dimension_numbers=("NCHW", "OIHW", "NCHW"),
            feature_group_count=groups, precision=jax.lax.Precision.HIGHEST)

    def bn(x, params):
        g, b, m, v = params
        s = g / jnp.sqrt(v + EPS)
        return x * s[None, :, None, None] + (b - m * s)[None, :, None, None]

    def lk(y):
        return jnp.where(y > 0, y, NEG_SLOPE * y)

    h = lk(bn(conv(x, tp["w1"]), tp["bn1"]))
    h = lk(bn(conv(h, tp["w2"], s=stride, pad=1, groups=cardinality), tp["bn2"]))
    h = lk(bn(conv(h, tp["w3"]), tp["bn3"]))
    h = bn(h, tp["bn"])
    if in_channels != out_channels:
        sc = bn(conv(x, tp["ws"]), tp["bns"])
    else:
        sc = x
    if stride != 1:
        n, c, hh, ww = sc.shape
        sc = sc.reshape(n, c, hh // stride, stride, ww // stride, stride)
        sc = sc.mean(axis=(3, 5))
    return lk(h + sc)


# --------------------------------------------------------------------------
if __name__ == "__main__":
    key = jax.random.PRNGKey(0)
    configs = [
        # (in_channels, cardinality, group_width, stride, N, H, W)
        (8, 2, 8, 1, 2, 16, 16),    # projection shortcut (in != out)
        (16, 2, 8, 1, 2, 16, 16),   # identity shortcut   (in == out)
    ]
    for cin, card, gwidth, stride, n, hh, ww in configs:
        kx, kp, key = jax.random.split(key, 3)
        cout = card * gwidth
        x = jax.random.normal(kx, (n, cin, hh, ww), jnp.float32)  # NCHW
        torch_p, pallas_p = make_params(kp, cin, card, gwidth)

        out = residual_block_forward(x, pallas_p, stride=stride)
        out = jax.block_until_ready(out)

        ref = reference_forward(x, torch_p, stride=stride, cardinality=card,
                                in_channels=cin, out_channels=cout)
        ref = jax.block_until_ready(ref)

        assert out.shape == (n, cout, hh // stride, ww // stride), out.shape
        # Tolerance reflects bf16 MXU operands (f32 accumulation / epilogue)
        # vs the all-f32 reference.
        np.testing.assert_allclose(np.asarray(out), np.asarray(ref),
                                   rtol=5e-2, atol=5e-2)
    print("KERNEL_OK")
</pallas_src>

<mosaic_0001>
module attributes {stable_mosaic.version = 11 : i64} {
  func.func @_conv1_proj_kernel(%arg0: i32, %arg1: memref<256x8xbf16, #tpu.memory_space<vmem>>, %arg2: memref<8x16xbf16, #tpu.memory_space<vmem>>, %arg3: memref<1x16xf32, #tpu.memory_space<vmem>>, %arg4: memref<8x16xbf16, #tpu.memory_space<vmem>>, %arg5: memref<1x16xf32, #tpu.memory_space<vmem>>, %arg6: memref<256x16xbf16, #tpu.memory_space<vmem>>, %arg7: memref<256x16xf32, #tpu.memory_space<vmem>>) attributes {dimension_semantics = [#tpu.dimension_semantics<parallel>], iteration_bounds = array<i64: 2>, scalar_prefetch = 0 : i64, scratch_operands = 0 : i64, tpu.core_type = #tpu.core_type<tc>, window_params = [{transform_indices = @transform_0, window_bounds = array<i64: 256, 8>}, {pipeline_mode = #tpu.pipeline_mode<synchronous>, transform_indices = @transform_1, window_bounds = array<i64: 8, 16>}, {pipeline_mode = #tpu.pipeline_mode<synchronous>, transform_indices = @transform_2, window_bounds = array<i64: 1, 16>}, {pipeline_mode = #tpu.pipeline_mode<synchronous>, transform_indices = @transform_3, window_bounds = array<i64: 8, 16>}, {pipeline_mode = #tpu.pipeline_mode<synchronous>, transform_indices = @transform_4, window_bounds = array<i64: 1, 16>}, {transform_indices = @transform_5, window_bounds = array<i64: 256, 16>}, {transform_indices = @transform_6, window_bounds = array<i64: 256, 16>}]} {
    %c0 = arith.constant 0 : index
    %c0_0 = arith.constant 0 : index
    %0 = vector.load %arg1[%c0, %c0_0] : memref<256x8xbf16, #tpu.memory_space<vmem>>, vector<256x8xbf16>
    %c0_1 = arith.constant 0 : index
    %c0_2 = arith.constant 0 : index
    %1 = vector.load %arg2[%c0_1, %c0_2] : memref<8x16xbf16, #tpu.memory_space<vmem>>, vector<8x16xbf16>
    %cst = arith.constant dense<0.000000e+00> : vector<256x16xf32>
    %2 = tpu.matmul %0, %1, %cst {dimension_numbers = #tpu.dot_dimension_numbers<[1], [0], [0], [1], [0, 0, 1, 1], [], []>} : vector<256x8xbf16>, vector<8x16xbf16>, vector<256x16xf32> -> vector<256x16xf32>
    %c0_3 = arith.constant 0 : index
    %c0_4 = arith.constant 0 : index
    %3 = vector.load %arg3[%c0_3, %c0_4] : memref<1x16xf32, #tpu.memory_space<vmem>>, vector<1x16xf32>
    %4 = vector.broadcast %3 : vector<1x16xf32> to vector<256x16xf32>
    %5 = arith.addf %2, %4 : vector<256x16xf32>
    %cst_5 = arith.constant 0.000000e+00 : f32
    %6 = vector.broadcast %cst_5 : f32 to vector<256x16xf32>
    %7 = arith.cmpf ogt, %5, %6 : vector<256x16xf32>
    %cst_6 = arith.constant 0.00999999977 : f32
    %8 = vector.broadcast %cst_6 : f32 to vector<256x16xf32>
    %9 = arith.mulf %8, %5 : vector<256x16xf32>
    %10 = arith.select %7, %5, %9 : vector<256x16xi1>, vector<256x16xf32>
    %11 = arith.truncf %10 : vector<256x16xf32> to vector<256x16xbf16>
    %c0_7 = arith.constant 0 : index
    %c0_8 = arith.constant 0 : index
    %12 = vector.load %arg6[%c0_7, %c0_8] : memref<256x16xbf16, #tpu.memory_space<vmem>>, vector<256x16xbf16>
    tpu.vector_store %arg6[%c0_7, %c0_8], %11 {strides = array<i32>} : memref<256x16xbf16, #tpu.memory_space<vmem>>, vector<256x16xbf16>,
    %c0_9 = arith.constant 0 : index
    %c0_10 = arith.constant 0 : index
    %13 = vector.load %arg4[%c0_9, %c0_10] : memref<8x16xbf16, #tpu.memory_space<vmem>>, vector<8x16xbf16>
    %cst_11 = arith.constant dense<0.000000e+00> : vector<256x16xf32>
    %14 = tpu.matmul %0, %13, %cst_11 {dimension_numbers = #tpu.dot_dimension_numbers<[1], [0], [0], [1], [0, 0, 1, 1], [], []>} : vector<256x8xbf16>, vector<8x16xbf16>, vector<256x16xf32> -> vector<256x16xf32>
    %c0_12 = arith.constant 0 : index
    %c0_13 = arith.constant 0 : index
    %15 = vector.load %arg5[%c0_12, %c0_13] : memref<1x16xf32, #tpu.memory_space<vmem>>, vector<1x16xf32>
    %16 = vector.broadcast %15 : vector<1x16xf32> to vector<256x16xf32>
    %17 = arith.addf %14, %16 : vector<256x16xf32>
    %c0_14 = arith.constant 0 : index
    %c0_15 = arith.constant 0 : index
    %18 = vector.load %arg7[%c0_14, %c0_15] : memref<256x16xf32, #tpu.memory_space<vmem>>, vector<256x16xf32>
    tpu.vector_store %arg7[%c0_14, %c0_15], %17 {strides = array<i32>} : memref<256x16xf32, #tpu.memory_space<vmem>>, vector<256x16xf32>,
    return
  }
  func.func @transform_0(%arg0: i32) -> (i32, i32) {
    %c0_i32 = arith.constant 0 : i32
    %c0_i32_0 = arith.constant 0 : i32
    return %arg0, %c0_i32 : i32, i32
  }
  func.func @transform_1(%arg0: i32) -> (i32, i32) {
    %c0_i32 = arith.constant 0 : i32
    %c0_i32_0 = arith.constant 0 : i32
    %c0_i32_1 = arith.constant 0 : i32
    return %c0_i32, %c0_i32_0 : i32, i32
  }
  func.func @transform_2(%arg0: i32) -> (i32, i32) {
    %c0_i32 = arith.constant 0 : i32
    %c0_i32_0 = arith.constant 0 : i32
    %c0_i32_1 = arith.constant 0 : i32
    return %c0_i32, %c0_i32_0 : i32, i32
  }
  func.func @transform_3(%arg0: i32) -> (i32, i32) {
    %c0_i32 = arith.constant 0 : i32
    %c0_i32_0 = arith.constant 0 : i32
    %c0_i32_1 = arith.constant 0 : i32
    return %c0_i32, %c0_i32_0 : i32, i32
  }
  func.func @transform_4(%arg0: i32) -> (i32, i32) {
    %c0_i32 = arith.constant 0 : i32
    %c0_i32_0 = arith.constant 0 : i32
    %c0_i32_1 = arith.constant 0 : i32
    return %c0_i32, %c0_i32_0 : i32, i32
  }
  func.func @transform_5(%arg0: i32) -> (i32, i32) {
    %c0_i32 = arith.constant 0 : i32
    %c0_i32_0 = arith.constant 0 : i32
    return %arg0, %c0_i32 : i32, i32
  }
  func.func @transform_6(%arg0: i32) -> (i32, i32) {
    %c0_i32 = arith.constant 0 : i32
    %c0_i32_0 = arith.constant 0 : i32
    return %arg0, %c0_i32 : i32, i32
  }
}

</mosaic_0001>

<llo_original>
// kernel: tpu_custom_call.1
$region0: #{tpu_custom_call.1}
  #allocation0 [shape = 'u32[]', space=smem, size = 0x4, offset = 0x4, fixed_abs, tag = 'smem constant byte address 0x4 - core index']
  #allocation1 [shape = 'u32[144,128]{1,0:T(1,128)}', space=vmem, size = 0x12000, scoped, tag = 'internal scratch']
  %s0 = inlined_call_operand.vmem [shape: bf16[512,8], index: 0, kind: input, shape index: {}]
  %s1 = inlined_call_operand.vmem [shape: bf16[8,16], index: 1, kind: input, shape index: {}]
  %s2 = inlined_call_operand.vmem [shape: f32[1,16], index: 2, kind: input, shape index: {}]
  %s3 = inlined_call_operand.vmem [shape: bf16[8,16], index: 3, kind: input, shape index: {}]
  %s4 = inlined_call_operand.vmem [shape: f32[1,16], index: 4, kind: input, shape index: {}]
  %s5 = inlined_call_operand.vmem [shape: bf16[512,16], index: 5, kind: output, shape index: {0}]
  %s6 = inlined_call_operand.vmem [shape: f32[512,16], index: 6, kind: output, shape index: {1}]
  %7 = xla_tuple %s5, %s6
  %s8 = sld [smem:[#allocation0]]
  $region61: #{tpu_custom_call.1} parent=0
    _
  %s10 = ssub.s32 1, %s8
  %s11 = scalar_select 0, %s10, %s8
  loop: start=0, step=1, limit=4
  $region2: #{tpu_custom_call.1} parent=0 // loop_pre_header
    _
  $region3: #{tpu_custom_call.1} parent=0 // loop_header
    %s13 = sphi 0, %s17
    %p14 = scmp.ge.s32.totalorder %s13, 4
    %s23 = sphi 0, %s25
    %s26 = sphi 0, %s23
    %s27 = sphi 0, %s26
    %s43 = sphi 0, %s27
    %s47 = sphi 0, %s47
    %s49 = sphi 0, %s47
    %s50 = sphi 0, %s49
    %s64 = sphi 0, %s50
    %s68 = sphi 0, %s68
    %s70 = sphi 0, %s68
    %s71 = sphi 0, %s70
    %s85 = sphi 0, %s71
    %s89 = sphi 0, %s89
    %s91 = sphi 0, %s89
    %s92 = sphi 0, %s91
    %s106 = sphi 0, %s92
    %s110 = sphi 0, %s110
    %s112 = sphi 0, %s110
    %s113 = sphi 0, %s112
    %s127 = sphi 0, %s113
    %s133 = sphi 0, %s135
    %s136 = sphi 0, %s133
    %s137 = sphi 0, %s136
    %s153 = sphi 0, %s137
    %s159 = sphi 0, %s161
    %s162 = sphi 0, %s159
    %s163 = sphi 0, %s162
    %s179 = sphi 0, %s163
  $region4: #{tpu_custom_call.1} parent=0 // loop_header_branch
    %16 = sbr.rel (%p14) target = $region8
  $region5: #{tpu_custom_call.1} parent=0 // loop_body
    %s18 = ssub.s32 %s13, 1
    %s19 = ssub.s32 %s13, 2
    %s20 = sadd.s32 %s13, 1
    %s21 = ssub.s32 %s13, %s20
    %p22 = scmp.eq.s32.totalorder %s21, 0
    %s24 = sadd.s32 %s23, 1
    %s25 = scalar_select %p22, %s23, %s24
    %p28 = pneg %p22
    %p29 = scmp.eq.s32.totalorder %s13, 1
    %p30 = por %p28, %p29
    %p31 = scmp.ne.s32.totalorder %s23, %s26
    %p32 = scmp.eq.s32.totalorder %s13, 0
    %p33 = por %p31, %p32
    %p34 = scmp.ne.s32.totalorder %s23, %s26
    %p35 = scmp.eq.s32.totalorder %s18, 1
    %p36 = por %p34, %p35
    %p37 = scmp.ne.s32.totalorder %s26, %s27
    %p38 = scmp.eq.s32.totalorder %s18, 0
    %p39 = por %p37, %p38
    %p40 = scmp.ne.s32.totalorder %s26, %s27
    %p41 = scmp.eq.s32.totalorder %s19, 1
    %p42 = por %p40, %p41
    %p44 = scmp.ne.s32.totalorder %s27, %s43
    %p45 = scmp.eq.s32.totalorder %s19, 0
    %p46 = por %p44, %p45
    %s48 = sadd.s32 %s47, 1
    %p51 = scmp.eq.s32.totalorder %s13, 1
    %p52 = scmp.ne.s32.totalorder %s47, %s49
    %p53 = scmp.eq.s32.totalorder %s13, 0
    %p54 = por %p52, %p53
    %p55 = scmp.ne.s32.totalorder %s47, %s49
    %p56 = scmp.eq.s32.totalorder %s18, 1
    %p57 = por %p55, %p56
    %p58 = scmp.ne.s32.totalorder %s49, %s50
    %p59 = scmp.eq.s32.totalorder %s18, 0
    %p60 = por %p58, %p59
    %p61 = scmp.ne.s32.totalorder %s49, %s50
    %p62 = scmp.eq.s32.totalorder %s19, 1
    %p63 = por %p61, %p62
    %p65 = scmp.ne.s32.totalorder %s50, %s64
    %p66 = scmp.eq.s32.totalorder %s19, 0
    %p67 = por %p65, %p66
    %s69 = sadd.s32 %s68, 1
    %p72 = scmp.eq.s32.totalorder %s13, 1
    %p73 = scmp.ne.s32.totalorder %s68, %s70
    %p74 = scmp.eq.s32.totalorder %s13, 0
    %p75 = por %p73, %p74
    %p76 = scmp.ne.s32.totalorder %s68, %s70
    %p77 = scmp.eq.s32.totalorder %s18, 1
    %p78 = por %p76, %p77
    %p79 = scmp.ne.s32.totalorder %s70, %s71
    %p80 = scmp.eq.s32.totalorder %s18, 0
    %p81 = por %p79, %p80
    %p82 = scmp.ne.s32.totalorder %s70, %s71
    %p83 = scmp.eq.s32.totalorder %s19, 1
    %p84 = por %p82, %p83
    %p86 = scmp.ne.s32.totalorder %s71, %s85
    %p87 = scmp.eq.s32.totalorder %s19, 0
    %p88 = por %p86, %p87
    %s90 = sadd.s32 %s89, 1
    %p93 = scmp.eq.s32.totalorder %s13, 1
    %p94 = scmp.ne.s32.totalorder %s89, %s91
    %p95 = scmp.eq.s32.totalorder %s13, 0
    %p96 = por %p94, %p95
    %p97 = scmp.ne.s32.totalorder %s89, %s91
    %p98 = scmp.eq.s32.totalorder %s18, 1
    %p99 = por %p97, %p98
    %p100 = scmp.ne.s32.totalorder %s91, %s92
    %p101 = scmp.eq.s32.totalorder %s18, 0
    %p102 = por %p100, %p101
    %p103 = scmp.ne.s32.totalorder %s91, %s92
    %p104 = scmp.eq.s32.totalorder %s19, 1
    %p105 = por %p103, %p104
    %p107 = scmp.ne.s32.totalorder %s92, %s106
    %p108 = scmp.eq.s32.totalorder %s19, 0
    %p109 = por %p107, %p108
    %s111 = sadd.s32 %s110, 1
    %p114 = scmp.eq.s32.totalorder %s13, 1
    %p115 = scmp.ne.s32.totalorder %s110, %s112
    %p116 = scmp.eq.s32.totalorder %s13, 0
    %p117 = por %p115, %p116
    %p118 = scmp.ne.s32.totalorder %s110, %s112
    %p119 = scmp.eq.s32.totalorder %s18, 1
    %p120 = por %p118, %p119
    %p121 = scmp.ne.s32.totalorder %s112, %s113
    %p122 = scmp.eq.s32.totalorder %s18, 0
    %p123 = por %p121, %p122
    %p124 = scmp.ne.s32.totalorder %s112, %s113
    %p125 = scmp.eq.s32.totalorder %s19, 1
    %p126 = por %p124, %p125
    %p128 = scmp.ne.s32.totalorder %s113, %s127
    %p129 = scmp.eq.s32.totalorder %s19, 0
    %p130 = por %p128, %p129
    %s131 = ssub.s32 %s13, %s20
    %p132 = scmp.eq.s32.totalorder %s131, 0
    %s134 = sadd.s32 %s133, 1
    %s135 = scalar_select %p132, %s133, %s134
    %p138 = pneg %p132
    %p139 = scmp.eq.s32.totalorder %s13, 1
    %p140 = por %p138, %p139
    %p141 = scmp.ne.s32.totalorder %s133, %s136
    %p142 = scmp.eq.s32.totalorder %s13, 0
    %p143 = por %p141, %p142
    %p144 = scmp.ne.s32.totalorder %s133, %s136
    %p145 = scmp.eq.s32.totalorder %s18, 1
    %p146 = por %p144, %p145
    %p147 = scmp.ne.s32.totalorder %s136, %s137
    %p148 = scmp.eq.s32.totalorder %s18, 0
    %p149 = por %p147, %p148
    %p150 = scmp.ne.s32.totalorder %s136, %s137
    %p151 = scmp.eq.s32.totalorder %s19, 1
    %p152 = por %p150, %p151
    %p154 = scmp.ne.s32.totalorder %s137, %s153
    %p155 = scmp.eq.s32.totalorder %s19, 0
    %p156 = por %p154, %p155
    %s157 = ssub.s32 %s13, %s20
    %p158 = scmp.eq.s32.totalorder %s157, 0
    %s160 = sadd.s32 %s159, 1
    %s161 = scalar_select %p158, %s159, %s160
    %p164 = pneg %p158
    %p165 = scmp.eq.s32.totalorder %s13, 1
    %p166 = por %p164, %p165
    %p167 = scmp.ne.s32.totalorder %s159, %s162
    %p168 = scmp.eq.s32.totalorder %s13, 0
    %p169 = por %p167, %p168
    %p170 = scmp.ne.s32.totalorder %s159, %s162
    %p171 = scmp.eq.s32.totalorder %s18, 1
    %p172 = por %p170, %p171
    %p173 = scmp.ne.s32.totalorder %s162, %s163
    %p174 = scmp.eq.s32.totalorder %s18, 0
    %p175 = por %p173, %p174
    %p176 = scmp.ne.s32.totalorder %s162, %s163
    %p177 = scmp.eq.s32.totalorder %s19, 1
    %p178 = por %p176, %p177
    %p180 = scmp.ne.s32.totalorder %s163, %s179
    %p181 = scmp.eq.s32.totalorder %s19, 0
    %p182 = por %p180, %p181
    %p183 = scmp.le.s32.totalorder 1, %s13
    %p184 = scmp.lt.s32.totalorder %s13, 3
    %p185 = pnand %p183, %p184
    %p186 = pneg %p185
    // Predicated region
    $region9: #{tpu_custom_call.1} parent=5 // pred_check
      _
    $region10: #{tpu_custom_call.1} parent=5 // pred_check_branch
      %188 = sbr.rel (%p185) target = $region12
    $region11: #{tpu_custom_call.1} parent=5 // pred_region
      %s189 = ssub.s32 %s13, 1
      // Predicated region
      $region13: #{tpu_custom_call.1} parent=11 // pred_check
        %p190 = pneg %p60
      $region14: #{tpu_custom_call.1} parent=11 // pred_check_branch
        %192 = sbr.rel (%p190) target = $region16
      $region15: #{tpu_custom_call.1} parent=11 // pred_region
        _
      $region16: #{tpu_custom_call.1} parent=11 // pred_fallthru
        _
      // Predicated region
      $region17: #{tpu_custom_call.1} parent=11 // pred_check
        %p193 = pneg %p81
      $region18: #{tpu_custom_call.1} parent=11 // pred_check_branch
        %195 = sbr.rel (%p193) target = $region20
      $region19: #{tpu_custom_call.1} parent=11 // pred_region
        _
      $region20: #{tpu_custom_call.1} parent=11 // pred_fallthru
        _
      // Predicated region
      $region21: #{tpu_custom_call.1} parent=11 // pred_check
        %p196 = pneg %p102
      $region22: #{tpu_custom_call.1} parent=11 // pred_check_branch
        %198 = sbr.rel (%p196) target = $region24
      $region23: #{tpu_custom_call.1} parent=11 // pred_region
        _
      $region24: #{tpu_custom_call.1} parent=11 // pred_fallthru
        _
      // Predicated region
      $region25: #{tpu_custom_call.1} parent=11 // pred_check
        %p199 = pneg %p123
      $region26: #{tpu_custom_call.1} parent=11 // pred_check_branch
        %201 = sbr.rel (%p199) target = $region28
      $region27: #{tpu_custom_call.1} parent=11 // pred_region
        _
      $region28: #{tpu_custom_call.1} parent=11 // pred_fallthru
        _
    $region12: #{tpu_custom_call.1} parent=5 // pred_fallthru
      _
    %p202 = scmp.lt.s32.totalorder %s13, 2
    // Predicated region
    $region29: #{tpu_custom_call.1} parent=5 // pred_check
      %p203 = pneg %p202
    $region30: #{tpu_custom_call.1} parent=5 // pred_check_branch
      %205 = sbr.rel (%p203) target = $region32
    $region31: #{tpu_custom_call.1} parent=5 // pred_region
      // Predicated region
      $region33: #{tpu_custom_call.1} parent=31 // pred_check
        %p206 = pneg %p33
      $region34: #{tpu_custom_call.1} parent=31 // pred_check_branch
        %208 = sbr.rel (%p206) target = $region36
      $region35: #{tpu_custom_call.1} parent=31 // pred_region
        %s209 = smul.u32 32, %s13
        %p210 = scmp.lt.s32.totalorder %s209, 63
        %s211 = scalar_select %p210, %s209, 63
        %s212 = smul.addr %s211, 4
        %s213 = scalar_lea.vmem %s0, %s212
        %s214 = smul.u32 32, %s13
      $region36: #{tpu_custom_call.1} parent=31 // pred_fallthru
        _
    $region32: #{tpu_custom_call.1} parent=5 // pred_fallthru
      _
    %p215 = scmp.le.s32.totalorder 1, %s13
    %p216 = scmp.lt.s32.totalorder %s13, 3
    %p217 = pnand %p215, %p216
    %p218 = pneg %p217
    // Predicated region
    $region37: #{tpu_custom_call.1} parent=5 // pred_check
      _
    $region38: #{tpu_custom_call.1} parent=5 // pred_check_branch
      %220 = sbr.rel (%p217) target = $region40
    $region39: #{tpu_custom_call.1} parent=5 // pred_region
      %s221 = ssub.s32 %s13, 1
      %s222 = smul.u32 32, %s18
      %p223 = scmp.lt.s32.totalorder %s222, 63
      %s224 = scalar_select %p223, %s222, 63
      %s225 = smul.addr %s224, 4
      %s226 = scalar_lea.vmem %s0, %s225
      %p227 = pneg %p39
      %p228 = pneg %p36
      %p229 = pneg %p60
      %p230 = pneg %p57
      %p231 = pneg %p81
      %p232 = pneg %p78
      %p233 = pneg %p102
      %p234 = pneg %p99
      %p235 = pneg %p123
      %p236 = pneg %p120
      %p237 = pneg %p149
      %p238 = pneg %p146
      %s239 = smul.u32 32, %s18
      %p240 = scmp.lt.s32.totalorder %s239, 63
      %s241 = scalar_select %p240, %s239, 63
      %s242 = smul.addr %s241, 4
      %s243 = scalar_lea.vmem %s5, %s242
      %p244 = pneg %p175
      %p245 = pneg %p172
      %s246 = smul.u32 32, %s18
      %p247 = scmp.lt.s32.totalorder %s246, 63
      %s248 = scalar_select %p247, %s246, 63
      %s249 = smul.addr %s248, 8
      %s250 = scalar_lea.vmem %s6, %s249
      %s251 = smul.u32 32, %s18
      %p252 = scmp.lt.s32.totalorder %s251, 63
      %s253 = scalar_select %p252, %s251, 63
      %s254 = smul.addr %s253, 4
      %s255 = scalar_lea.vmem %s0, %s254
      %s256 = smul.u32 32, %s18
      %s257 = smul.u32 32, %s18
      %p258 = scmp.lt.s32.totalorder %s257, 63
      %s259 = scalar_select %p258, %s257, 63
      %s260 = smul.addr %s259, 4
      %s261 = scalar_lea.vmem %s5, %s260
      %s262 = smul.u32 32, %s18
      %s263 = smul.u32 32, %s18
      %p264 = scmp.lt.s32.totalorder %s263, 63
      %s265 = scalar_select %p264, %s263, 63
      %s266 = smul.addr %s265, 8
      %s267 = scalar_lea.vmem %s6, %s266
      %s268 = smul.u32 32, %s18
      %v270 = vld [vmem:[%s255] sm:$0xf]
      %v271 = vld [vmem:[%s255 + $0x4] sm:$0xf]
      %v272 = vld [vmem:[%s255 + $0x8] sm:$0xf]
      %v273 = vld [vmem:[%s255 + $0xc] sm:$0xf]
      %v274 = vld [vmem:[%s255 + $0x10] sm:$0xf]
      %v275 = vld [vmem:[%s255 + $0x14] sm:$0xf]
      %v276 = vld [vmem:[%s255 + $0x18] sm:$0xf]
      %v277 = vld [vmem:[%s255 + $0x1c] sm:$0xf]
      %v278 = vld [vmem:[%s255 + $0x20] sm:$0xf]
      %v279 = vld [vmem:[%s255 + $0x24] sm:$0xf]
      %v280 = vld [vmem:[%s255 + $0x28] sm:$0xf]
      %v281 = vld [vmem:[%s255 + $0x2c] sm:$0xf]
      %v282 = vld [vmem:[%s255 + $0x30] sm:$0xf]
      %v283 = vld [vmem:[%s255 + $0x34] sm:$0xf]
      %v284 = vld [vmem:[%s255 + $0x38] sm:$0xf]
      %v285 = vld [vmem:[%s255 + $0x3c] sm:$0xf]
      %v286 = vld [vmem:[%s255 + $0x40] sm:$0xf]
      %v287 = vld [vmem:[%s255 + $0x44] sm:$0xf]
      %v288 = vld [vmem:[%s255 + $0x48] sm:$0xf]
      %v289 = vld [vmem:[%s255 + $0x4c] sm:$0xf]
      %v290 = vld [vmem:[%s255 + $0x50] sm:$0xf]
      %v291 = vld [vmem:[%s255 + $0x54] sm:$0xf]
      %v292 = vld [vmem:[%s255 + $0x58] sm:$0xf]
      %v293 = vld [vmem:[%s255 + $0x5c] sm:$0xf]
      %v294 = vld [vmem:[%s255 + $0x60] sm:$0xf]
      %v295 = vld [vmem:[%s255 + $0x64] sm:$0xf]
      %v296 = vld [vmem:[%s255 + $0x68] sm:$0xf]
      %v297 = vld [vmem:[%s255 + $0x6c] sm:$0xf]
      %v298 = vld [vmem:[%s255 + $0x70] sm:$0xf]
      %v299 = vld [vmem:[%s255 + $0x74] sm:$0xf]
      %v300 = vld [vmem:[%s255 + $0x78] sm:$0xf]
      %v301 = vld [vmem:[%s255 + $0x7c] sm:$0xf]
      %v302 = vld [vmem:[%s1] sm:$0xf]
      %v303 = vld [vmem:[%s2] sm:$0x1]
      %v305 = vlaneseq
      %v306 = vshrl.u32 %v305, 7
      %v307 = vsub.s32 0, %v306
      %v308 = vrot.slane %v303, %v307
      %v342 = vunpack.c.l.b16 %v270
      %v343 = vunpack.c.l.b16 %v271
      %v344 = vunpack.c.l.b16 %v272
      %v345 = vunpack.c.l.b16 %v273
      %v346 = vunpack.c.l.b16 %v274
      %v347 = vunpack.c.l.b16 %v275
      %v348 = vunpack.c.l.b16 %v276
      %v349 = vunpack.c.l.b16 %v277
      %v350 = vunpack.c.l.b16 %v278
      %v351 = vunpack.c.l.b16 %v279
      %v352 = vunpack.c.l.b16 %v280
      %v353 = vunpack.c.l.b16 %v281
      %v354 = vunpack.c.l.b16 %v282
      %v355 = vunpack.c.l.b16 %v283
      %v356 = vunpack.c.l.b16 %v284
      %v357 = vunpack.c.l.b16 %v285
      %v358 = vunpack.c.l.b16 %v286
      %v359 = vunpack.c.l.b16 %v287
      %v360 = vunpack.c.l.b16 %v288
      %v361 = vunpack.c.l.b16 %v289
      %v362 = vunpack.c.l.b16 %v290
      %v363 = vunpack.c.l.b16 %v291
      %v364 = vunpack.c.l.b16 %v292
      %v365 = vunpack.c.l.b16 %v293
      %v366 = vunpack.c.l.b16 %v294
      %v367 = vunpack.c.l.b16 %v295
      %v368 = vunpack.c.l.b16 %v296
      %v369 = vunpack.c.l.b16 %v297
      %v370 = vunpack.c.l.b16 %v298
      %v371 = vunpack.c.l.b16 %v299
      %v372 = vunpack.c.l.b16 %v300
      %v373 = vunpack.c.l.b16 %v301
      %v374 = vpack.c.b16 %v343, %v342
      %v375 = vpack.c.b16 %v345, %v344
      %v376 = vpack.c.b16 %v347, %v346
      %v377 = vpack.c.b16 %v349, %v348
      %v378 = vpack.c.b16 %v351, %v350
      %v379 = vpack.c.b16 %v353, %v352
      %v380 = vpack.c.b16 %v355, %v354
      %v381 = vpack.c.b16 %v357, %v356
      %v382 = vpack.c.b16 %v359, %v358
      %v383 = vpack.c.b16 %v361, %v360
      %v384 = vpack.c.b16 %v363, %v362
      %v385 = vpack.c.b16 %v365, %v364
      %v386 = vpack.c.b16 %v367, %v366
      %v387 = vpack.c.b16 %v369, %v368
      %v388 = vpack.c.b16 %v371, %v370
      %v389 = vpack.c.b16 %v373, %v372
      %vm390 = vcmask 64512
      %v392 = vsel %vm390, %v374, 0
      %v395 = vsel %vm390, %v375, 0
      %v398 = vsel %vm390, %v376, 0
      %v401 = vsel %vm390, %v377, 0
      %v404 = vsel %vm390, %v378, 0
      %v407 = vsel %vm390, %v379, 0
      %v410 = vsel %vm390, %v380, 0
      %v413 = vsel %vm390, %v381, 0
      %v416 = vsel %vm390, %v382, 0
      %v419 = vsel %vm390, %v383, 0
      %v422 = vsel %vm390, %v384, 0
      %v425 = vsel %vm390, %v385, 0
      %v428 = vsel %vm390, %v386, 0
      %v431 = vsel %vm390, %v387, 0
      %v434 = vsel %vm390, %v388, 0
      %v437 = vsel %vm390, %v389, 0
      %vm439 = vcmask 1043456
      %v441 = vsel %vm439, %v302, 0
      %443 = vmatprep.subr.bf16.mxu0 0
      %444 = vmatpush1.bf16.msra.mxu0 %v441
      %445 = vmatprep.subr.bf16.mxu0 0
      %446 = vmatpush1.bf16.msra.mxu0 0
      %447 = vmatprep.subr.bf16.mxu0 0
      %448 = vmatpush1.bf16.msra.mxu0 0
      %449 = vmatprep.subr.bf16.mxu0 0
      %450 = vmatpush1.bf16.msra.mxu0 0
      %451 = vmatprep.subr.bf16.mxu0 0
      %452 = vmatpush1.bf16.msra.mxu0 0
      %453 = vmatprep.subr.bf16.mxu0 0
      %454 = vmatpush1.bf16.msra.mxu0 0
      %455 = vmatprep.subr.bf16.mxu0 0
      %456 = vmatpush1.bf16.msra.mxu0 0
      %457 = vmatprep.subr.bf16.mxu0 0
      %458 = vmatpush1.bf16.msra.mxu0 0
      %459 = vmatprep.subr.bf16.mxu0 0
      %460 = vmatpush1.bf16.msra.mxu0 0
      %461 = vmatprep.subr.bf16.mxu0 0
      %462 = vmatpush1.bf16.msra.mxu0 0
      %463 = vmatprep.subr.bf16.mxu0 0
      %464 = vmatpush1.bf16.msra.mxu0 0
      %465 = vmatprep.subr.bf16.mxu0 0
      %466 = vmatpush1.bf16.msra.mxu0 0
      %467 = vmatprep.subr.bf16.mxu0 0
      %468 = vmatpush1.bf16.msra.mxu0 0
      %469 = vmatprep.subr.bf16.mxu0 0
      %470 = vmatpush1.bf16.msra.mxu0 0
      %471 = vmatprep.subr.bf16.mxu0 0
      %472 = vmatpush1.bf16.msra.mxu0 0
      %473 = vmatprep.subr.bf16.mxu0 0
      %474 = vmatpush1.bf16.msra.mxu0 0
      %475 = vmatprep.mubr.bf16.mxu0 0
      %476 = vmatmul.mubr.bf16.gmra.mrb[0].mxu0 %v392
      %v477 = vpop.f32.mrb[0].mxu0
      %v478 = vadd.f32 %v308, %v477
      %v479 = vpop.f32.mrb[0].mxu0
      %v480 = vpop.f32.mrb[0].mxu0
      %v481 = vadd.f32 %v308, %v480
      %v482 = vpop.f32.mrb[0].mxu0
      %483 = vmatprep.mubr.bf16.mxu0 0
      %484 = vmatmul.mubr.bf16.gmra.mrb[0].mxu0 %v395
      %v485 = vpop.f32.mrb[0].mxu0
      %v486 = vadd.f32 %v308, %v485
      %v487 = vpop.f32.mrb[0].mxu0
      %v488 = vpop.f32.mrb[0].mxu0
      %v489 = vadd.f32 %v308, %v488
      %v490 = vpop.f32.mrb[0].mxu0
      %491 = vmatprep.mubr.bf16.mxu0 0
      %492 = vmatmul.mubr.bf16.gmra.mrb[0].mxu0 %v398
      %v493 = vpop.f32.mrb[0].mxu0
      %v494 = vadd.f32 %v308, %v493
      %v495 = vpop.f32.mrb[0].mxu0
      %v496 = vpop.f32.mrb[0].mxu0
      %v497 = vadd.f32 %v308, %v496
      %v498 = vpop.f32.mrb[0].mxu0
      %499 = vmatprep.mubr.bf16.mxu0 0
      %500 = vmatmul.mubr.bf16.gmra.mrb[0].mxu0 %v401
      %v501 = vpop.f32.mrb[0].mxu0
      %v502 = vadd.f32 %v308, %v501
      %v503 = vpop.f32.mrb[0].mxu0
      %v504 = vpop.f32.mrb[0].mxu0
      %v505 = vadd.f32 %v308, %v504
      %v506 = vpop.f32.mrb[0].mxu0
      %507 = vmatprep.mubr.bf16.mxu0 0
      %508 = vmatmul.mubr.bf16.gmra.mrb[0].mxu0 %v404
      %v509 = vpop.f32.mrb[0].mxu0
      %v510 = vadd.f32 %v308, %v509
      %v511 = vpop.f32.mrb[0].mxu0
      %v512 = vpop.f32.mrb[0].mxu0
      %v513 = vadd.f32 %v308, %v512
      %v514 = vpop.f32.mrb[0].mxu0
      %515 = vmatprep.mubr.bf16.mxu0 0
      %516 = vmatmul.mubr.bf16.gmra.mrb[0].mxu0 %v407
      %v517 = vpop.f32.mrb[0].mxu0
      %v518 = vadd.f32 %v308, %v517
      %v519 = vpop.f32.mrb[0].mxu0
      %v520 = vpop.f32.mrb[0].mxu0
      %v521 = vadd.f32 %v308, %v520
      %v522 = vpop.f32.mrb[0].mxu0
      %523 = vmatprep.mubr.bf16.mxu0 0
      %524 = vmatmul.mubr.bf16.gmra.mrb[0].mxu0 %v410
      %v525 = vpop.f32.mrb[0].mxu0
      %v526 = vadd.f32 %v308, %v525
      %v527 = vpop.f32.mrb[0].mxu0
      %v528 = vpop.f32.mrb[0].mxu0
      %v529 = vadd.f32 %v308, %v528
      %v530 = vpop.f32.mrb[0].mxu0
      %531 = vmatprep.mubr.bf16.mxu0 0
      %532 = vmatmul.mubr.bf16.gmra.mrb[0].mxu0 %v413
      %v533 = vpop.f32.mrb[0].mxu0
      %v534 = vadd.f32 %v308, %v533
      %v535 = vpop.f32.mrb[0].mxu0
      %v536 = vpop.f32.mrb[0].mxu0
      %v537 = vadd.f32 %v308, %v536
      %v538 = vpop.f32.mrb[0].mxu0
      %539 = vmatprep.mubr.bf16.mxu0 0
      %540 = vmatmul.mubr.bf16.gmra.mrb[0].mxu0 %v416
      %v541 = vpop.f32.mrb[0].mxu0
      %v542 = vadd.f32 %v308, %v541
      %v543 = vpop.f32.mrb[0].mxu0
      %v544 = vpop.f32.mrb[0].mxu0
      %v545 = vadd.f32 %v308, %v544
      %v546 = vpop.f32.mrb[0].mxu0
      %547 = vmatprep.mubr.bf16.mxu0 0
      %548 = vmatmul.mubr.bf16.gmra.mrb[0].mxu0 %v419
      %v549 = vpop.f32.mrb[0].mxu0
      %v550 = vadd.f32 %v308, %v549
      %v551 = vpop.f32.mrb[0].mxu0
      %v552 = vpop.f32.mrb[0].mxu0
      %v553 = vadd.f32 %v308, %v552
      %v554 = vpop.f32.mrb[0].mxu0
      %555 = vmatprep.mubr.bf16.mxu0 0
      %556 = vmatmul.mubr.bf16.gmra.mrb[0].mxu0 %v422
      %v557 = vpop.f32.mrb[0].mxu0
      %v558 = vadd.f32 %v308, %v557
      %v559 = vpop.f32.mrb[0].mxu0
      %v560 = vpop.f32.mrb[0].mxu0
      %v561 = vadd.f32 %v308, %v560
      %v562 = vpop.f32.mrb[0].mxu0
      %563 = vmatprep.mubr.bf16.mxu0 0
      %564 = vmatmul.mubr.bf16.gmra.mrb[0].mxu0 %v425
      %v565 = vpop.f32.mrb[0].mxu0
      %v566 = vadd.f32 %v308, %v565
      %v567 = vpop.f32.mrb[0].mxu0
      %v568 = vpop.f32.mrb[0].mxu0
      %v569 = vadd.f32 %v308, %v568
      %v570 = vpop.f32.mrb[0].mxu0
      %571 = vmatprep.mubr.bf16.mxu0 0
      %572 = vmatmul.mubr.bf16.gmra.mrb[0].mxu0 %v428
      %v573 = vpop.f32.mrb[0].mxu0
      %v574 = vadd.f32 %v308, %v573
      %v575 = vpop.f32.mrb[0].mxu0
      %v576 = vpop.f32.mrb[0].mxu0
      %v577 = vadd.f32 %v308, %v576
      %v578 = vpop.f32.mrb[0].mxu0
      %579 = vmatprep.mubr.bf16.mxu0 0
      %580 = vmatmul.mubr.bf16.gmra.mrb[0].mxu0 %v431
      %v581 = vpop.f32.mrb[0].mxu0
      %v582 = vadd.f32 %v308, %v581
      %v583 = vpop.f32.mrb[0].mxu0
      %v584 = vpop.f32.mrb[0].mxu0
      %v585 = vadd.f32 %v308, %v584
      %v586 = vpop.f32.mrb[0].mxu0
      %587 = vmatprep.mubr.bf16.mxu0 0
      %588 = vmatmul.mubr.bf16.gmra.mrb[0].mxu0 %v434
      %v589 = vpop.f32.mrb[0].mxu0
      %v590 = vadd.f32 %v308, %v589
      %v591 = vpop.f32.mrb[0].mxu0
      %v592 = vpop.f32.mrb[0].mxu0
      %v593 = vadd.f32 %v308, %v592
      %v594 = vpop.f32.mrb[0].mxu0
      %595 = vmatprep.mubr.bf16.mxu0 0
      %596 = vmatmul.mubr.bf16.gmra.mrb[0].mxu0 %v437
      %v597 = vpop.f32.mrb[0].mxu0
      %v598 = vadd.f32 %v308, %v597
      %v599 = vpop.f32.mrb[0].mxu0
      %v600 = vpop.f32.mrb[0].mxu0
      %v601 = vadd.f32 %v308, %v600
      %v602 = vpop.f32.mrb[0].mxu0
      %603 = vdwg.mxu0
      %vm604 = vcmp.gt.f32.partialorder %v478, 0.0
      %vm605 = vcmp.gt.f32.partialorder %v481, 0.0
      %vm606 = vcmp.gt.f32.partialorder %v486, 0.0
      %vm607 = vcmp.gt.f32.partialorder %v489, 0.0
      %vm608 = vcmp.gt.f32.partialorder %v494, 0.0
      %vm609 = vcmp.gt.f32.partialorder %v497, 0.0
      %vm610 = vcmp.gt.f32.partialorder %v502, 0.0
      %vm611 = vcmp.gt.f32.partialorder %v505, 0.0
      %vm612 = vcmp.gt.f32.partialorder %v510, 0.0
      %vm613 = vcmp.gt.f32.partialorder %v513, 0.0
      %vm614 = vcmp.gt.f32.partialorder %v518, 0.0
      %vm615 = vcmp.gt.f32.partialorder %v521, 0.0
      %vm616 = vcmp.gt.f32.partialorder %v526, 0.0
      %vm617 = vcmp.gt.f32.partialorder %v529, 0.0
      %vm618 = vcmp.gt.f32.partialorder %v534, 0.0
      %vm619 = vcmp.gt.f32.partialorder %v537, 0.0
      %vm620 = vcmp.gt.f32.partialorder %v542, 0.0
      %vm621 = vcmp.gt.f32.partialorder %v545, 0.0
      %vm622 = vcmp.gt.f32.partialorder %v550, 0.0
      %vm623 = vcmp.gt.f32.partialorder %v553, 0.0
      %vm624 = vcmp.gt.f32.partialorder %v558, 0.0
      %vm625 = vcmp.gt.f32.partialorder %v561, 0.0
      %vm626 = vcmp.gt.f32.partialorder %v566, 0.0
      %vm627 = vcmp.gt.f32.partialorder %v569, 0.0
      %vm628 = vcmp.gt.f32.partialorder %v574, 0.0
      %vm629 = vcmp.gt.f32.partialorder %v577, 0.0
      %vm630 = vcmp.gt.f32.partialorder %v582, 0.0
      %vm631 = vcmp.gt.f32.partialorder %v585, 0.0
      %vm632 = vcmp.gt.f32.partialorder %v590, 0.0
      %vm633 = vcmp.gt.f32.partialorder %v593, 0.0
      %vm634 = vcmp.gt.f32.partialorder %v598, 0.0
      %vm635 = vcmp.gt.f32.partialorder %v601, 0.0
      %v636 = vmul.f32 %v478, 0.01
      %v637 = vmul.f32 %v481, 0.01
      %v638 = vmul.f32 %v486, 0.01
      %v639 = vmul.f32 %v489, 0.01
      %v640 = vmul.f32 %v494, 0.01
      %v641 = vmul.f32 %v497, 0.01
      %v642 = vmul.f32 %v502, 0.01
      %v643 = vmul.f32 %v505, 0.01
      %v644 = vmul.f32 %v510, 0.01
      %v645 = vmul.f32 %v513, 0.01
      %v646 = vmul.f32 %v518, 0.01
      %v647 = vmul.f32 %v521, 0.01
      %v648 = vmul.f32 %v526, 0.01
      %v649 = vmul.f32 %v529, 0.01
      %v650 = vmul.f32 %v534, 0.01
      %v651 = vmul.f32 %v537, 0.01
      %v652 = vmul.f32 %v542, 0.01
      %v653 = vmul.f32 %v545, 0.01
      %v654 = vmul.f32 %v550, 0.01
      %v655 = vmul.f32 %v553, 0.01
      %v656 = vmul.f32 %v558, 0.01
      %v657 = vmul.f32 %v561, 0.01
      %v658 = vmul.f32 %v566, 0.01
      %v659 = vmul.f32 %v569, 0.01
      %v660 = vmul.f32 %v574, 0.01
      %v661 = vmul.f32 %v577, 0.01
      %v662 = vmul.f32 %v582, 0.01
      %v663 = vmul.f32 %v585, 0.01
      %v664 = vmul.f32 %v590, 0.01
      %v665 = vmul.f32 %v593, 0.01
      %v666 = vmul.f32 %v598, 0.01
      %v667 = vmul.f32 %v601, 0.01
      %v668 = vsel %vm604, %v478, %v636
      %v669 = vsel %vm605, %v481, %v637
      %v670 = vsel %vm606, %v486, %v638
      %v671 = vsel %vm607, %v489, %v639
      %v672 = vsel %vm608, %v494, %v640
      %v673 = vsel %vm609, %v497, %v641
      %v674 = vsel %vm610, %v502, %v642
      %v675 = vsel %vm611, %v505, %v643
      %v676 = vsel %vm612, %v510, %v644
      %v677 = vsel %vm613, %v513, %v645
      %v678 = vsel %vm614, %v518, %v646
      %v679 = vsel %vm615, %v521, %v647
      %v680 = vsel %vm616, %v526, %v648
      %v681 = vsel %vm617, %v529, %v649
      %v682 = vsel %vm618, %v534, %v650
      %v683 = vsel %vm619, %v537, %v651
      %v684 = vsel %vm620, %v542, %v652
      %v685 = vsel %vm621, %v545, %v653
      %v686 = vsel %vm622, %v550, %v654
      %v687 = vsel %vm623, %v553, %v655
      %v688 = vsel %vm624, %v558, %v656
      %v689 = vsel %vm625, %v561, %v657
      %v690 = vsel %vm626, %v566, %v658
      %v691 = vsel %vm627, %v569, %v659
      %v692 = vsel %vm628, %v574, %v660
      %v693 = vsel %vm629, %v577, %v661
      %v694 = vsel %vm630, %v582, %v662
      %v695 = vsel %vm631, %v585, %v663
      %v696 = vsel %vm632, %v590, %v664
      %v697 = vsel %vm633, %v593, %v665
      %v698 = vsel %vm634, %v598, %v666
      %v699 = vsel %vm635, %v601, %v667
      %v700 = vpack.c.bf16 %v669, %v668
      %v701 = vpack.c.bf16 %v671, %v670
      %v702 = vpack.c.bf16 %v673, %v672
      %v703 = vpack.c.bf16 %v675, %v674
      %v704 = vpack.c.bf16 %v677, %v676
      %v705 = vpack.c.bf16 %v679, %v678
      %v706 = vpack.c.bf16 %v681, %v680
      %v707 = vpack.c.bf16 %v683, %v682
      %v708 = vpack.c.bf16 %v685, %v684
      %v709 = vpack.c.bf16 %v687, %v686
      %v710 = vpack.c.bf16 %v689, %v688
      %v711 = vpack.c.bf16 %v691, %v690
      %v712 = vpack.c.bf16 %v693, %v692
      %v713 = vpack.c.bf16 %v695, %v694
      %v714 = vpack.c.bf16 %v697, %v696
      %v715 = vpack.c.bf16 %v699, %v698
      %v732 = vunpack.c.l.b16 %v700
      %v733 = vunpack.c.h.b16 %v700
      %v734 = vunpack.c.l.b16 %v701
      %v735 = vunpack.c.h.b16 %v701
      %v736 = vunpack.c.l.b16 %v702
      %v737 = vunpack.c.h.b16 %v702
      %v738 = vunpack.c.l.b16 %v703
      %v739 = vunpack.c.h.b16 %v703
      %v740 = vunpack.c.l.b16 %v704
      %v741 = vunpack.c.h.b16 %v704
      %v742 = vunpack.c.l.b16 %v705
      %v743 = vunpack.c.h.b16 %v705
      %v744 = vunpack.c.l.b16 %v706
      %v745 = vunpack.c.h.b16 %v706
      %v746 = vunpack.c.l.b16 %v707
      %v747 = vunpack.c.h.b16 %v707
      %v748 = vunpack.c.l.b16 %v708
      %v749 = vunpack.c.h.b16 %v708
      %v750 = vunpack.c.l.b16 %v709
      %v751 = vunpack.c.h.b16 %v709
      %v752 = vunpack.c.l.b16 %v710
      %v753 = vunpack.c.h.b16 %v710
      %v754 = vunpack.c.l.b16 %v711
      %v755 = vunpack.c.h.b16 %v711
      %v756 = vunpack.c.l.b16 %v712
      %v757 = vunpack.c.h.b16 %v712
      %v758 = vunpack.c.l.b16 %v713
      %v759 = vunpack.c.h.b16 %v713
      %v760 = vunpack.c.l.b16 %v714
      %v761 = vunpack.c.h.b16 %v714
      %v762 = vunpack.c.l.b16 %v715
      %v763 = vunpack.c.h.b16 %v715
      %v764 = vpack.c.b16 %v732, %v732
      %v765 = vpack.c.b16 %v733, %v733
      %v766 = vpack.c.b16 %v734, %v734
      %v767 = vpack.c.b16 %v735, %v735
      %v768 = vpack.c.b16 %v736, %v736
      %v769 = vpack.c.b16 %v737, %v737
      %v770 = vpack.c.b16 %v738, %v738
      %v771 = vpack.c.b16 %v739, %v739
      %v772 = vpack.c.b16 %v740, %v740
      %v773 = vpack.c.b16 %v741, %v741
      %v774 = vpack.c.b16 %v742, %v742
      %v775 = vpack.c.b16 %v743, %v743
      %v776 = vpack.c.b16 %v744, %v744
      %v777 = vpack.c.b16 %v745, %v745
      %v778 = vpack.c.b16 %v746, %v746
      %v779 = vpack.c.b16 %v747, %v747
      %v780 = vpack.c.b16 %v748, %v748
      %v781 = vpack.c.b16 %v749, %v749
      %v782 = vpack.c.b16 %v750, %v750
      %v783 = vpack.c.b16 %v751, %v751
      %v784 = vpack.c.b16 %v752, %v752
      %v785 = vpack.c.b16 %v753, %v753
      %v786 = vpack.c.b16 %v754, %v754
      %v787 = vpack.c.b16 %v755, %v755
      %v788 = vpack.c.b16 %v756, %v756
      %v789 = vpack.c.b16 %v757, %v757
      %v790 = vpack.c.b16 %v758, %v758
      %v791 = vpack.c.b16 %v759, %v759
      %v792 = vpack.c.b16 %v760, %v760
      %v793 = vpack.c.b16 %v761, %v761
      %v794 = vpack.c.b16 %v762, %v762
      %v795 = vpack.c.b16 %v763, %v763
      %vm828 = vcmask 125952
      %829 = vst.msk [vmem:[%s261] sm:$0xf] %vm828, %v764
      %830 = vst.msk [vmem:[%s261 + $0x4] sm:$0xf] %vm828, %v765
      %831 = vst.msk [vmem:[%s261 + $0x8] sm:$0xf] %vm828, %v766
      %832 = vst.msk [vmem:[%s261 + $0xc] sm:$0xf] %vm828, %v767
      %833 = vst.msk [vmem:[%s261 + $0x10] sm:$0xf] %vm828, %v768
      %834 = vst.msk [vmem:[%s261 + $0x14] sm:$0xf] %vm828, %v769
      %835 = vst.msk [vmem:[%s261 + $0x18] sm:$0xf] %vm828, %v770
      %836 = vst.msk [vmem:[%s261 + $0x1c] sm:$0xf] %vm828, %v771
      %837 = vst.msk [vmem:[%s261 + $0x20] sm:$0xf] %vm828, %v772
      %838 = vst.msk [vmem:[%s261 + $0x24] sm:$0xf] %vm828, %v773
      %839 = vst.msk [vmem:[%s261 + $0x28] sm:$0xf] %vm828, %v774
      %840 = vst.msk [vmem:[%s261 + $0x2c] sm:$0xf] %vm828, %v775
      %841 = vst.msk [vmem:[%s261 + $0x30] sm:$0xf] %vm828, %v776
      %842 = vst.msk [vmem:[%s261 + $0x34] sm:$0xf] %vm828, %v777
      %843 = vst.msk [vmem:[%s261 + $0x38] sm:$0xf] %vm828, %v778
      %844 = vst.msk [vmem:[%s261 + $0x3c] sm:$0xf] %vm828, %v779
      %845 = vst.msk [vmem:[%s261 + $0x40] sm:$0xf] %vm828, %v780
      %846 = vst.msk [vmem:[%s261 + $0x44] sm:$0xf] %vm828, %v781
      %847 = vst.msk [vmem:[%s261 + $0x48] sm:$0xf] %vm828, %v782
      %848 = vst.msk [vmem:[%s261 + $0x4c] sm:$0xf] %vm828, %v783
      %849 = vst.msk [vmem:[%s261 + $0x50] sm:$0xf] %vm828, %v784
      %850 = vst.msk [vmem:[%s261 + $0x54] sm:$0xf] %vm828, %v785
      %851 = vst.msk [vmem:[%s261 + $0x58] sm:$0xf] %vm828, %v786
      %852 = vst.msk [vmem:[%s261 + $0x5c] sm:$0xf] %vm828, %v787
      %853 = vst.msk [vmem:[%s261 + $0x60] sm:$0xf] %vm828, %v788
      %854 = vst.msk [vmem:[%s261 + $0x64] sm:$0xf] %vm828, %v789
      %855 = vst.msk [vmem:[%s261 + $0x68] sm:$0xf] %vm828, %v790
      %856 = vst.msk [vmem:[%s261 + $0x6c] sm:$0xf] %vm828, %v791
      %857 = vst.msk [vmem:[%s261 + $0x70] sm:$0xf] %vm828, %v792
      %858 = vst.msk [vmem:[%s261 + $0x74] sm:$0xf] %vm828, %v793
      %859 = vst.msk [vmem:[%s261 + $0x78] sm:$0xf] %vm828, %v794
      %860 = vst.msk [vmem:[%s261 + $0x7c] sm:$0xf] %vm828, %v795
      %v861 = vld [vmem:[%s3] sm:$0xf]
      %v862 = vld [vmem:[%s4] sm:$0x1]
      %v864 = vlaneseq
      %v865 = vshrl.u32 %v864, 7
      %v866 = vsub.s32 0, %v865
      %v867 = vrot.slane %v862, %v866
      %v870 = vsel %vm439, %v861, 0
      %872 = vmatprep.subr.bf16.mxu0 0
      %873 = vmatpush1.bf16.msra.mxu0 %v870
      %874 = vmatprep.subr.bf16.mxu0 0
      %875 = vmatpush1.bf16.msra.mxu0 0
      %876 = vmatprep.subr.bf16.mxu0 0
      %877 = vmatpush1.bf16.msra.mxu0 0
      %878 = vmatprep.subr.bf16.mxu0 0
      %879 = vmatpush1.bf16.msra.mxu0 0
      %880 = vmatprep.subr.bf16.mxu0 0
      %881 = vmatpush1.bf16.msra.mxu0 0
      %882 = vmatprep.subr.bf16.mxu0 0
      %883 = vmatpush1.bf16.msra.mxu0 0
      %884 = vmatprep.subr.bf16.mxu0 0
      %885 = vmatpush1.bf16.msra.mxu0 0
      %886 = vmatprep.subr.bf16.mxu0 0
      %887 = vmatpush1.bf16.msra.mxu0 0
      %888 = vmatprep.subr.bf16.mxu0 0
      %889 = vmatpush1.bf16.msra.mxu0 0
      %890 = vmatprep.subr.bf16.mxu0 0
      %891 = vmatpush1.bf16.msra.mxu0 0
      %892 = vmatprep.subr.bf16.mxu0 0
      %893 = vmatpush1.bf16.msra.mxu0 0
      %894 = vmatprep.subr.bf16.mxu0 0
      %895 = vmatpush1.bf16.msra.mxu0 0
      %896 = vmatprep.subr.bf16.mxu0 0
      %897 = vmatpush1.bf16.msra.mxu0 0
      %898 = vmatprep.subr.bf16.mxu0 0
      %899 = vmatpush1.bf16.msra.mxu0 0
      %900 = vmatprep.subr.bf16.mxu0 0
      %901 = vmatpush1.bf16.msra.mxu0 0
      %902 = vmatprep.subr.bf16.mxu0 0
      %903 = vmatpush1.bf16.msra.mxu0 0
      %904 = vmatprep.mubr.bf16.mxu0 0
      %905 = vmatmul.mubr.bf16.gmra.mrb[0].mxu0 %v392
      %v906 = vpop.f32.mrb[0].mxu0
      %v907 = vadd.f32 %v867, %v906
      %v908 = vpop.f32.mrb[0].mxu0
      %v909 = vpop.f32.mrb[0].mxu0
      %v910 = vadd.f32 %v867, %v909
      %v911 = vpop.f32.mrb[0].mxu0
      %912 = vmatprep.mubr.bf16.mxu0 0
      %913 = vmatmul.mubr.bf16.gmra.mrb[0].mxu0 %v395
      %v914 = vpop.f32.mrb[0].mxu0
      %v915 = vadd.f32 %v867, %v914
      %v916 = vpop.f32.mrb[0].mxu0
      %v917 = vpop.f32.mrb[0].mxu0
      %v918 = vadd.f32 %v867, %v917
      %v919 = vpop.f32.mrb[0].mxu0
      %920 = vmatprep.mubr.bf16.mxu0 0
      %921 = vmatmul.mubr.bf16.gmra.mrb[0].mxu0 %v398
      %v922 = vpop.f32.mrb[0].mxu0
      %v923 = vadd.f32 %v867, %v922
      %v924 = vpop.f32.mrb[0].mxu0
      %v925 = vpop.f32.mrb[0].mxu0
      %v926 = vadd.f32 %v867, %v925
      %v927 = vpop.f32.mrb[0].mxu0
      %928 = vmatprep.mubr.bf16.mxu0 0
      %929 = vmatmul.mubr.bf16.gmra.mrb[0].mxu0 %v401
      %v930 = vpop.f32.mrb[0].mxu0
      %v931 = vadd.f32 %v867, %v930
      %v932 = vpop.f32.mrb[0].mxu0
      %v933 = vpop.f32.mrb[0].mxu0
      %v934 = vadd.f32 %v867, %v933
      %v935 = vpop.f32.mrb[0].mxu0
      %936 = vmatprep.mubr.bf16.mxu0 0
      %937 = vmatmul.mubr.bf16.gmra.mrb[0].mxu0 %v404
      %v938 = vpop.f32.mrb[0].mxu0
      %v939 = vadd.f32 %v867, %v938
      %v940 = vpop.f32.mrb[0].mxu0
      %v941 = vpop.f32.mrb[0].mxu0
      %v942 = vadd.f32 %v867, %v941
      %v943 = vpop.f32.mrb[0].mxu0
      %944 = vmatprep.mubr.bf16.mxu0 0
      %945 = vmatmul.mubr.bf16.gmra.mrb[0].mxu0 %v407
      %v946 = vpop.f32.mrb[0].mxu0
      %v947 = vadd.f32 %v867, %v946
      %v948 = vpop.f32.mrb[0].mxu0
      %v949 = vpop.f32.mrb[0].mxu0
      %v950 = vadd.f32 %v867, %v949
      %v951 = vpop.f32.mrb[0].mxu0
      %952 = vmatprep.mubr.bf16.mxu0 0
      %953 = vmatmul.mubr.bf16.gmra.mrb[0].mxu0 %v410
      %v954 = vpop.f32.mrb[0].mxu0
      %v955 = vadd.f32 %v867, %v954
      %v956 = vpop.f32.mrb[0].mxu0
      %v957 = vpop.f32.mrb[0].mxu0
      %v958 = vadd.f32 %v867, %v957
      %v959 = vpop.f32.mrb[0].mxu0
      %960 = vmatprep.mubr.bf16.mxu0 0
      %961 = vmatmul.mubr.bf16.gmra.mrb[0].mxu0 %v413
      %v962 = vpop.f32.mrb[0].mxu0
      %v963 = vadd.f32 %v867, %v962
      %v964 = vpop.f32.mrb[0].mxu0
      %v965 = vpop.f32.mrb[0].mxu0
      %v966 = vadd.f32 %v867, %v965
      %v967 = vpop.f32.mrb[0].mxu0
      %968 = vmatprep.mubr.bf16.mxu0 0
      %969 = vmatmul.mubr.bf16.gmra.mrb[0].mxu0 %v416
      %v970 = vpop.f32.mrb[0].mxu0
      %v971 = vadd.f32 %v867, %v970
      %v972 = vpop.f32.mrb[0].mxu0
      %v973 = vpop.f32.mrb[0].mxu0
      %v974 = vadd.f32 %v867, %v973
      %v975 = vpop.f32.mrb[0].mxu0
      %976 = vmatprep.mubr.bf16.mxu0 0
      %977 = vmatmul.mubr.bf16.gmra.mrb[0].mxu0 %v419
      %v978 = vpop.f32.mrb[0].mxu0
      %v979 = vadd.f32 %v867, %v978
      %v980 = vpop.f32.mrb[0].mxu0
      %v981 = vpop.f32.mrb[0].mxu0
      %v982 = vadd.f32 %v867, %v981
      %v983 = vpop.f32.mrb[0].mxu0
      %984 = vmatprep.mubr.bf16.mxu0 0
      %985 = vmatmul.mubr.bf16.gmra.mrb[0].mxu0 %v422
      %v986 = vpop.f32.mrb[0].mxu0
      %v987 = vadd.f32 %v867, %v986
      %v988 = vpop.f32.mrb[0].mxu0
      %v989 = vpop.f32.mrb[0].mxu0
      %v990 = vadd.f32 %v867, %v989
      %v991 = vpop.f32.mrb[0].mxu0
      %992 = vmatprep.mubr.bf16.mxu0 0
      %993 = vmatmul.mubr.bf16.gmra.mrb[0].mxu0 %v425
      %v994 = vpop.f32.mrb[0].mxu0
      %v995 = vadd.f32 %v867, %v994
      %v996 = vpop.f32.mrb[0].mxu0
      %v997 = vpop.f32.mrb[0].mxu0
      %v998 = vadd.f32 %v867, %v997
      %v999 = vpop.f32.mrb[0].mxu0
      %1000 = vmatprep.mubr.bf16.mxu0 0
      %1001 = vmatmul.mubr.bf16.gmra.mrb[0].mxu0 %v428
      %v1002 = vpop.f32.mrb[0].mxu0
      %v1003 = vadd.f32 %v867, %v1002
      %v1004 = vpop.f32.mrb[0].mxu0
      %v1005 = vpop.f32.mrb[0].mxu0
      %v1006 = vadd.f32 %v867, %v1005
      %v1007 = vpop.f32.mrb[0].mxu0
      %1008 = vmatprep.mubr.bf16.mxu0 0
      %1009 = vmatmul.mubr.bf16.gmra.mrb[0].mxu0 %v431
      %v1010 = vpop.f32.mrb[0].mxu0
      %v1011 = vadd.f32 %v867, %v1010
      %v1012 = vpop.f32.mrb[0].mxu0
      %v1013 = vpop.f32.mrb[0].mxu0
      %v1014 = vadd.f32 %v867, %v1013
      %v1015 = vpop.f32.mrb[0].mxu0
      %1016 = vmatprep.mubr.bf16.mxu0 0
      %1017 = vmatmul.mubr.bf16.gmra.mrb[0].mxu0 %v434
      %v1018 = vpop.f32.mrb[0].mxu0
      %v1019 = vadd.f32 %v867, %v1018
      %v1020 = vpop.f32.mrb[0].mxu0
      %v1021 = vpop.f32.mrb[0].mxu0
      %v1022 = vadd.f32 %v867, %v1021
      %v1023 = vpop.f32.mrb[0].mxu0
      %1024 = vmatprep.mubr.bf16.mxu0 0
      %1025 = vmatmul.mubr.bf16.gmra.mrb[0].mxu0 %v437
      %v1026 = vpop.f32.mrb[0].mxu0
      %v1027 = vadd.f32 %v867, %v1026
      %v1028 = vpop.f32.mrb[0].mxu0
      %v1029 = vpop.f32.mrb[0].mxu0
      %v1030 = vadd.f32 %v867, %v1029
      %v1031 = vpop.f32.mrb[0].mxu0
      %1032 = vdwg.mxu0
      %vm1033 = vcmask 130048
      %1034 = vst.msk [vmem:[%s267] sm:$0xff] %vm1033, %v907
      %1035 = vst.msk [vmem:[%s267 + $0x8] sm:$0xff] %vm1033, %v910
      %1036 = vst.msk [vmem:[%s267 + $0x10] sm:$0xff] %vm1033, %v915
      %1037 = vst.msk [vmem:[%s267 + $0x18] sm:$0xff] %vm1033, %v918
      %1038 = vst.msk [vmem:[%s267 + $0x20] sm:$0xff] %vm1033, %v923
      %1039 = vst.msk [vmem:[%s267 + $0x28] sm:$0xff] %vm1033, %v926
      %1040 = vst.msk [vmem:[%s267 + $0x30] sm:$0xff] %vm1033, %v931
      %1041 = vst.msk [vmem:[%s267 + $0x38] sm:$0xff] %vm1033, %v934
      %1042 = vst.msk [vmem:[%s267 + $0x40] sm:$0xff] %vm1033, %v939
      %1043 = vst.msk [vmem:[%s267 + $0x48] sm:$0xff] %vm1033, %v942
      %1044 = vst.msk [vmem:[%s267 + $0x50] sm:$0xff] %vm1033, %v947
      %1045 = vst.msk [vmem:[%s267 + $0x58] sm:$0xff] %vm1033, %v950
      %1046 = vst.msk [vmem:[%s267 + $0x60] sm:$0xff] %vm1033, %v955
      %1047 = vst.msk [vmem:[%s267 + $0x68] sm:$0xff] %vm1033, %v958
      %1048 = vst.msk [vmem:[%s267 + $0x70] sm:$0xff] %vm1033, %v963
      %1049 = vst.msk [vmem:[%s267 + $0x78] sm:$0xff] %vm1033, %v966
      %1050 = vst.msk [vmem:[%s267 + $0x80] sm:$0xff] %vm1033, %v971
      %1051 = vst.msk [vmem:[%s267 + $0x88] sm:$0xff] %vm1033, %v974
      %1052 = vst.msk [vmem:[%s267 + $0x90] sm:$0xff] %vm1033, %v979
      %1053 = vst.msk [vmem:[%s267 + $0x98] sm:$0xff] %vm1033, %v982
      %1054 = vst.msk [vmem:[%s267 + $0xa0] sm:$0xff] %vm1033, %v987
      %1055 = vst.msk [vmem:[%s267 + $0xa8] sm:$0xff] %vm1033, %v990
      %1056 = vst.msk [vmem:[%s267 + $0xb0] sm:$0xff] %vm1033, %v995
      %1057 = vst.msk [vmem:[%s267 + $0xb8] sm:$0xff] %vm1033, %v998
      %1058 = vst.msk [vmem:[%s267 + $0xc0] sm:$0xff] %vm1033, %v1003
      %1059 = vst.msk [vmem:[%s267 + $0xc8] sm:$0xff] %vm1033, %v1006
      %1060 = vst.msk [vmem:[%s267 + $0xd0] sm:$0xff] %vm1033, %v1011
      %1061 = vst.msk [vmem:[%s267 + $0xd8] sm:$0xff] %vm1033, %v1014
      %1062 = vst.msk [vmem:[%s267 + $0xe0] sm:$0xff] %vm1033, %v1019
      %1063 = vst.msk [vmem:[%s267 + $0xe8] sm:$0xff] %vm1033, %v1022
      %1064 = vst.msk [vmem:[%s267 + $0xf0] sm:$0xff] %vm1033, %v1027
      %1065 = vst.msk [vmem:[%s267 + $0xf8] sm:$0xff] %vm1033, %v1030
      %s1066 = smul.u32 32, %s18
      %p1067 = scmp.lt.s32.totalorder %s1066, 63
      %s1068 = scalar_select %p1067, %s1066, 63
      %s1069 = smul.addr %s1068, 4
      %s1070 = scalar_lea.vmem %s5, %s1069
      %s1071 = smul.u32 32, %s18
      %p1072 = scmp.lt.s32.totalorder %s1071, 63
      %s1073 = scalar_select %p1072, %s1071, 63
      %s1074 = smul.addr %s1073, 8
      %s1075 = scalar_lea.vmem %s6, %s1074
      // Predicated region
      $region41: #{tpu_custom_call.1} parent=39 // pred_check
        %p1076 = pneg %p146
      $region42: #{tpu_custom_call.1} parent=39 // pred_check_branch
        %1078 = sbr.rel (%p1076) target = $region44
      $region43: #{tpu_custom_call.1} parent=39 // pred_region
        %s1079 = smul.u32 32, %s18
      $region44: #{tpu_custom_call.1} parent=39 // pred_fallthru
        _
      // Predicated region
      $region45: #{tpu_custom_call.1} parent=39 // pred_check
        %p1080 = pneg %p172
      $region46: #{tpu_custom_call.1} parent=39 // pred_check_branch
        %1082 = sbr.rel (%p1080) target = $region48
      $region47: #{tpu_custom_call.1} parent=39 // pred_region
        %s1083 = smul.u32 32, %s18
      $region48: #{tpu_custom_call.1} parent=39 // pred_fallthru
        _
    $region40: #{tpu_custom_call.1} parent=5 // pred_fallthru
      _
    %p1084 = scmp.le.s32.totalorder 2, %s13
    // Predicated region
    $region49: #{tpu_custom_call.1} parent=5 // pred_check
      %p1085 = pneg %p1084
    $region50: #{tpu_custom_call.1} parent=5 // pred_check_branch
      %1087 = sbr.rel (%p1085) target = $region52
    $region51: #{tpu_custom_call.1} parent=5 // pred_region
      %s1088 = ssub.s32 %s13, 2
      // Predicated region
      $region53: #{tpu_custom_call.1} parent=51 // pred_check
        %p1089 = pneg %p152
      $region54: #{tpu_custom_call.1} parent=51 // pred_check_branch
        %1091 = sbr.rel (%p1089) target = $region56
      $region55: #{tpu_custom_call.1} parent=51 // pred_region
        %s1092 = smul.u32 32, %s19
        %p1093 = scmp.lt.s32.totalorder %s1092, 63
        %s1094 = scalar_select %p1093, %s1092, 63
        %s1095 = smul.addr %s1094, 4
        %s1096 = scalar_lea.vmem %s5, %s1095
      $region56: #{tpu_custom_call.1} parent=51 // pred_fallthru
        _
      // Predicated region
      $region57: #{tpu_custom_call.1} parent=51 // pred_check
        %p1097 = pneg %p178
      $region58: #{tpu_custom_call.1} parent=51 // pred_check_branch
        %1099 = sbr.rel (%p1097) target = $region60
      $region59: #{tpu_custom_call.1} parent=51 // pred_region
        %s1100 = smul.u32 32, %s19
        %p1101 = scmp.lt.s32.totalorder %s1100, 63
        %s1102 = scalar_select %p1101, %s1100, 63
        %s1103 = smul.addr %s1102, 8
        %s1104 = scalar_lea.vmem %s6, %s1103
      $region60: #{tpu_custom_call.1} parent=51 // pred_fallthru
        _
    $region52: #{tpu_custom_call.1} parent=5 // pred_fallthru
      _
  $region6: #{tpu_custom_call.1} parent=0 // loop_footer
    %s17 = sadd.s32 1, %s13
  $region7: #{tpu_custom_call.1} parent=0 // loop_footer_branch
    %12 = sbr.rel target = $region3
  $region8: #{tpu_custom_call.1} parent=0 // loop_exit
    _

</llo_original>
